<compile_context>
chip_gen: v7x
topology: tpu7x:2x2x1
jax: 0.10.0
libtpu: 0.0.40
codegen_flags: <defaults>
</compile_context>

<pallas_src>
import jax
import jax.numpy as jnp
from jax.experimental import pallas as pl
from jax.experimental.pallas import tpu as pltpu


_SOFT_VMEM_CAP = 48 * 1024 * 1024  # headroom under v7x's 64 MiB physical VMEM


def _round_up(x: int, m: int) -> int:
    return ((x + m - 1) // m) * m


def _vmem_estimate_bytes(block, state_dim, params, x_itemsize):
    """Rough per-grid-step VMEM footprint (double-buffered tiles + weights +
    live-activation headroom).  Used to shrink the block / set vmem_limit."""
    def pad2(r, c, itemsize):
        return _round_up(max(r, 1), 8) * _round_up(max(c, 1), 128) * itemsize

    num_hidden = len(params) - 1
    total = 2 * pad2(block, state_dim, x_itemsize)      # double-buffered x tile
    total += 2 * pad2(1, block, 4)                      # double-buffered out row
    for (w, _) in params[:-1]:
        total += 2 * pad2(w.shape[0], w.shape[1], 2)    # bf16 hidden weights
    if num_hidden > 0:
        total += 2 * pad2(num_hidden, params[0][1].shape[1], 4)   # packed biases
    d_last = params[-1][0].shape[0]
    total += 2 * pad2(1, d_last, 4) + 2 * pad2(1, 1, 4)           # last row + bias
    widest = max([state_dim] + [w.shape[1] for (w, _) in params[:-1]])
    total += pad2(block, widest, 4) + pad2(block, widest, 2)      # live acts/spills
    return total


def _make_mlp_kernel(num_hidden: int, sub: int, n_sub: int):
    """Fused MLP kernel: all layers computed in VMEM for one batch block.

    Ref order (inputs, then output):
      x, w_hidden[0..num_hidden-1], b_hidden_packed (if num_hidden > 0),
      w_last_row, b_last, out
    x is (block, d_in); out is (1, block) — lane-dense row (block rows -> lanes).
    """

    def kernel(*refs):
        x_ref = refs[0]
        o_ref = refs[-1]
        if num_hidden > 0:
            w_refs = refs[1:1 + num_hidden]
            bh_ref = refs[1 + num_hidden]          # (num_hidden, mid) f32
            wl_ref = refs[2 + num_hidden]          # (1, mid) f32
            bl_ref = refs[3 + num_hidden]          # (1, 1) f32
        else:
            wl_ref = refs[1]                       # (1, state_dim) f32
            bl_ref = refs[2]                       # (1, 1) f32

        # Tiny; keep resident across the sub-tile loop.
        w_last = wl_ref[...]                       # (1, d_last) f32
        b_last = bl_ref[...]                       # (1, 1) f32

        # Statically unrolled sub-tile loop: amortizes per-grid-step overhead
        # with a large block while keeping per-iteration vreg live sets small.
        for s in range(n_sub):
            r0 = s * sub
            x_blk = x_ref[r0:r0 + sub, :]          # static slice of the block

            if num_hidden > 0:
                h_bf16 = x_blk                     # (sub, d_in) bf16
                a_f32 = None
                for li in range(num_hidden):
                    # MXU: bf16 x bf16 -> f32 accumulation.
                    acc = jnp.dot(h_bf16, w_refs[li][...],
                                  preferred_element_type=jnp.float32)
                    b = bh_ref[li:li + 1, :]       # (1, mid) f32, static slice
                    a_f32 = jnp.maximum(acc + b, 0.0)   # bias + ReLU in f32 (VPU)
                    h_bf16 = a_f32.astype(jnp.bfloat16)
            else:
                # Single-Linear path: stay in f32 (no precision loss).
                a_f32 = x_blk.astype(jnp.float32)

            # Final Linear(d_last -> 1): VPU multiply + XLU lane reduction
            # (keeps the MXU free; these slots are otherwise idle).
            v = jnp.sum(a_f32 * w_last, axis=-1, keepdims=True) + b_last  # (sub, 1)
            # Lane-dense store: transpose the final f32 column once (XLU slot).
            o_ref[:, r0:r0 + sub] = jnp.transpose(v).astype(o_ref.dtype)

    return kernel


def critic_ppo_forward(state, params, *, batch_block: int = 2048,
                       sub_tile: int = 512):
    """Runs the CriticPPO MLP via a single pallas_call.

    state:  (B, state_dim) float32
    params: list of (w, b) with w: (in, out), b: (1, out)
    returns (B, 1) float32
    """
    batch, state_dim = state.shape
    num_hidden = len(params) - 1
    x_itemsize = 2 if num_hidden > 0 else 4

    # ---- choose per-grid-step block and inner sub-tile ----------------------
    block = max(8, min(batch_block, _round_up(batch, 8)))
    if batch >= 256:
        # Keep the grid >= 2 steps so v7x megacore ("parallel") can shard work.
        block = min(block, _round_up(pl.cdiv(batch, 2), 8))
    # Explicit VMEM budget check (matters when mid_dim is large on v7x 64 MiB).
    while (_vmem_estimate_bytes(block, state_dim, params, x_itemsize)
           > _SOFT_VMEM_CAP and block > 8):
        block = max(8, _round_up(block // 2, 8))
    if block >= sub_tile:
        block = (block // sub_tile) * sub_tile
        sub = sub_tile
    else:
        sub = block
    n_sub = block // sub

    padded = pl.cdiv(batch, block) * block
    grid = padded // block
    if padded != batch:
        state = jnp.pad(state, ((0, padded - batch), (0, 0)))

    # bf16 input for the MXU when there are hidden layers (f32 accumulation in
    # kernel); pure f32 for the degenerate single-Linear case.
    x = state.astype(jnp.bfloat16) if num_hidden > 0 else state.astype(jnp.float32)

    hidden_ws = [w.astype(jnp.bfloat16) for (w, _) in params[:-1]]
    if num_hidden > 0:
        b_hidden = jnp.concatenate(
            [b for (_, b) in params[:-1]], axis=0).astype(jnp.float32)
    w_last, b_last = params[-1]
    w_last_row = jnp.transpose(w_last).astype(jnp.float32)   # (1, d_last_in)
    b_last = b_last.astype(jnp.float32)                      # (1, 1)

    # x: tiled over batch.  Weights/biases: full-array blocks with constant
    # index_map -> VMEM-resident across grid steps (no per-step re-fetch).
    # TODO(synk): could mark weight specs pipeline_mode=pl.Buffered(1) to drop
    # their second buffer; negligible here so left default for robustness.
    in_specs = [pl.BlockSpec((block, state_dim), lambda i: (i, 0))]
    args = [x]
    for w in hidden_ws:
        in_specs.append(pl.BlockSpec(w.shape, lambda i: (0, 0)))
        args.append(w)
    if num_hidden > 0:
        in_specs.append(pl.BlockSpec(b_hidden.shape, lambda i: (0, 0)))
        args.append(b_hidden)
    in_specs.append(pl.BlockSpec(w_last_row.shape, lambda i: (0, 0)))
    args.append(w_last_row)
    in_specs.append(pl.BlockSpec(b_last.shape, lambda i: (0, 0)))
    args.append(b_last)

    # Lane-dense output: one (1, block) row per grid step (tile rows -> lanes).
    out_spec = pl.BlockSpec((None, 1, block), lambda i: (i, 0, 0))

    est = _vmem_estimate_bytes(block, state_dim, params, x_itemsize)
    vmem_limit = int(min(64 << 20, max(32 << 20, 2 * est)))

    out = pl.pallas_call(
        _make_mlp_kernel(num_hidden, sub, n_sub),
        out_shape=jax.ShapeDtypeStruct((grid, 1, block), jnp.float32),
        grid_spec=pltpu.PrefetchScalarGridSpec(
            num_scalar_prefetch=0,
            grid=(grid,),
            in_specs=in_specs,
            out_specs=out_spec,
        ),
        compiler_params=pltpu.CompilerParams(
            # Batch-block axis shards across TensorCores on v7x megacore.
            dimension_semantics=("parallel",),
            vmem_limit_bytes=vmem_limit,
        ),
    )(*args)

    # Restore row order: tile i, lane j  ->  global row i*block + j.
    return out.reshape(padded, 1)[:batch]


def init_critic_ppo_params(key, mid_dim, num_layer, state_dim):
    """Synthetic params with the same layer shapes as the PyTorch module
    (weights stored transposed: (in, out))."""
    assert num_layer >= 1
    if num_layer == 1:
        dims = [(state_dim, 1)]
    else:
        dims = [(state_dim, mid_dim)]
        for _ in range(num_layer - 2):
            dims.append((mid_dim, mid_dim))
        dims.append((mid_dim, 1))

    params = []
    for (din, dout) in dims:
        key, kw, kb = jax.random.split(key, 3)
        scale = 1.0 / jnp.sqrt(jnp.float32(din))
        w = jax.random.uniform(kw, (din, dout), jnp.float32, -scale, scale)
        b = jax.random.uniform(kb, (1, dout), jnp.float32, -scale, scale)
        params.append((w, b))
    return params


def critic_ppo_reference_f32(state, params):
    """Pure f32 reference (original nn.Module semantics)."""
    h = state
    for li, (w, b) in enumerate(params):
        h = h @ w + b
        if li < len(params) - 1:
            h = jnp.maximum(h, 0.0)
    return h


def critic_ppo_reference_matched(state, params):
    """Precision-matched reference: bf16 matmul inputs, f32 accumulation,
    final layer as f32 multiply-reduce (mirrors the kernel exactly)."""
    num_hidden = len(params) - 1
    if num_hidden == 0:
        w, b = params[0]
        return jnp.sum(state * jnp.transpose(w), axis=-1, keepdims=True) + b
    h = state.astype(jnp.bfloat16)
    a = None
    for li in range(num_hidden):
        w, b = params[li]
        acc = jnp.dot(h, w.astype(jnp.bfloat16),
                      preferred_element_type=jnp.float32)
        a = jnp.maximum(acc + b, 0.0)
        h = a.astype(jnp.bfloat16)
    w, b = params[-1]
    return jnp.sum(a * jnp.transpose(w), axis=-1, keepdims=True) + b


if __name__ == "__main__":
    # Small shapes consistent with CriticPPO(mid_dim=32, num_layer=3,
    # state_dim=16, _action_dim=4); forward input: (batch, state_dim).
    mid_dim, num_layer, state_dim = 32, 3, 16
    batch = 200

    key = jax.random.PRNGKey(0)
    key, k_state = jax.random.split(key)
    state = jax.random.normal(k_state, (batch, state_dim), jnp.float32)
    params = init_critic_ppo_params(key, mid_dim, num_layer, state_dim)

    ref_matched = critic_ppo_reference_matched(state, params)
    ref_f32 = critic_ppo_reference_f32(state, params)

    # Small block/sub-tile: exercises padding, a 2-step grid and the inner loop.
    out = critic_ppo_forward(state, params, batch_block=128, sub_tile=64)
    out = jax.block_until_ready(out)
    assert out.shape == (batch, 1)
    assert jnp.allclose(out, ref_matched, atol=1e-4, rtol=1e-4)
    assert jnp.allclose(out, ref_f32, atol=2e-2, rtol=2e-2)

    # Default large-block path (single grid step, single sub-tile here).
    out_d = jax.block_until_ready(critic_ppo_forward(state, params))
    assert out_d.shape == (batch, 1)
    assert jnp.allclose(out_d, ref_matched, atol=1e-4, rtol=1e-4)

    # num_layer == 1 degenerate path (single Linear, kept in f32).
    key, k_state1 = jax.random.split(key)
    state1 = jax.random.normal(k_state1, (16, state_dim), jnp.float32)
    params1 = init_critic_ppo_params(key, mid_dim, 1, state_dim)
    out1 = jax.block_until_ready(critic_ppo_forward(state1, params1))
    assert out1.shape == (16, 1)
    assert jnp.allclose(out1, critic_ppo_reference_f32(state1, params1),
                        atol=1e-4, rtol=1e-4)

    print("KERNEL_OK")
</pallas_src>

<mosaic_0001>
module attributes {stable_mosaic.version = 11 : i64} {
  func.func @kernel(%arg0: i32, %arg1: memref<128x16xbf16, #tpu.memory_space<vmem>>, %arg2: memref<16x32xbf16, #tpu.memory_space<vmem>>, %arg3: memref<32x32xbf16, #tpu.memory_space<vmem>>, %arg4: memref<2x32xf32, #tpu.memory_space<vmem>>, %arg5: memref<1x32xf32, #tpu.memory_space<vmem>>, %arg6: memref<1x1xf32, #tpu.memory_space<vmem>>, %arg7: memref<1x1x128xf32, #tpu.memory_space<vmem>>) attributes {dimension_semantics = [#tpu.dimension_semantics<parallel>], iteration_bounds = array<i64: 2>, scalar_prefetch = 0 : i64, scratch_operands = 0 : i64, tpu.core_type = #tpu.core_type<tc>, window_params = [{transform_indices = @transform_0, window_bounds = array<i64: 128, 16>}, {pipeline_mode = #tpu.pipeline_mode<synchronous>, transform_indices = @transform_1, window_bounds = array<i64: 16, 32>}, {pipeline_mode = #tpu.pipeline_mode<synchronous>, transform_indices = @transform_2, window_bounds = array<i64: 32, 32>}, {pipeline_mode = #tpu.pipeline_mode<synchronous>, transform_indices = @transform_3, window_bounds = array<i64: 2, 32>}, {pipeline_mode = #tpu.pipeline_mode<synchronous>, transform_indices = @transform_4, window_bounds = array<i64: 1, 32>}, {pipeline_mode = #tpu.pipeline_mode<synchronous>, transform_indices = @transform_5, window_bounds = array<i64: 1, 1>}, {transform_indices = @transform_6, window_bounds = array<i64: 1, 1, 128>}]} {
    %c0 = arith.constant 0 : index
    %c0_0 = arith.constant 0 : index
    %0 = vector.load %arg5[%c0, %c0_0] : memref<1x32xf32, #tpu.memory_space<vmem>>, vector<1x32xf32>
    %c0_1 = arith.constant 0 : index
    %c0_2 = arith.constant 0 : index
    %1 = vector.load %arg6[%c0_1, %c0_2] : memref<1x1xf32, #tpu.memory_space<vmem>>, vector<1x1xf32>
    %c0_3 = arith.constant 0 : index
    %c0_4 = arith.constant 0 : index
    %2 = vector.load %arg1[%c0_3, %c0_4] : memref<128x16xbf16, #tpu.memory_space<vmem>>, vector<64x16xbf16>
    %c0_5 = arith.constant 0 : index
    %c0_6 = arith.constant 0 : index
    %3 = vector.load %arg2[%c0_5, %c0_6] : memref<16x32xbf16, #tpu.memory_space<vmem>>, vector<16x32xbf16>
    %cst = arith.constant dense<0.000000e+00> : vector<64x32xf32>
    %4 = tpu.matmul %2, %3, %cst {dimension_numbers = #tpu.dot_dimension_numbers<[1], [0], [0], [1], [0, 0, 1, 1], [], []>} : vector<64x16xbf16>, vector<16x32xbf16>, vector<64x32xf32> -> vector<64x32xf32>
    %c0_7 = arith.constant 0 : index
    %c0_8 = arith.constant 0 : index
    %5 = vector.load %arg4[%c0_7, %c0_8] : memref<2x32xf32, #tpu.memory_space<vmem>>, vector<1x32xf32>
    %6 = vector.broadcast %5 : vector<1x32xf32> to vector<64x32xf32>
    %7 = arith.addf %4, %6 : vector<64x32xf32>
    %cst_9 = arith.constant 0.000000e+00 : f32
    %8 = vector.broadcast %cst_9 : f32 to vector<64x32xf32>
    %9 = arith.maximumf %7, %8 : vector<64x32xf32>
    %10 = arith.truncf %9 : vector<64x32xf32> to vector<64x32xbf16>
    %c0_10 = arith.constant 0 : index
    %c0_11 = arith.constant 0 : index
    %11 = vector.load %arg3[%c0_10, %c0_11] : memref<32x32xbf16, #tpu.memory_space<vmem>>, vector<32x32xbf16>
    %cst_12 = arith.constant dense<0.000000e+00> : vector<64x32xf32>
    %12 = tpu.matmul %10, %11, %cst_12 {dimension_numbers = #tpu.dot_dimension_numbers<[1], [0], [0], [1], [0, 0, 1, 1], [], []>} : vector<64x32xbf16>, vector<32x32xbf16>, vector<64x32xf32> -> vector<64x32xf32>
    %c1 = arith.constant 1 : index
    %c0_13 = arith.constant 0 : index
    %13 = vector.load %arg4[%c1, %c0_13] : memref<2x32xf32, #tpu.memory_space<vmem>>, vector<1x32xf32>
    %14 = vector.broadcast %13 : vector<1x32xf32> to vector<64x32xf32>
    %15 = arith.addf %12, %14 : vector<64x32xf32>
    %cst_14 = arith.constant 0.000000e+00 : f32
    %16 = vector.broadcast %cst_14 : f32 to vector<64x32xf32>
    %17 = arith.maximumf %15, %16 : vector<64x32xf32>
    %18 = vector.broadcast %0 : vector<1x32xf32> to vector<64x32xf32>
    %19 = arith.mulf %17, %18 : vector<64x32xf32>
    %cst_15 = arith.constant dense<0.000000e+00> : vector<64xf32>
    %20 = vector.multi_reduction <add>, %19, %cst_15 [1] : vector<64x32xf32> to vector<64xf32>
    %21 = vector.shape_cast %20 : vector<64xf32> to vector<64x1xf32>
    %22 = vector.broadcast %1 : vector<1x1xf32> to vector<64x1xf32>
    %23 = arith.addf %21, %22 : vector<64x1xf32>
    %24 = tpu.transpose %23, [1, 0] : vector<64x1xf32> -> vector<1x64xf32>
    %c0_16 = arith.constant 0 : index
    %c0_17 = arith.constant 0 : index
    %c0_18 = arith.constant 0 : index
    %25 = vector.load %arg7[%c0_16, %c0_17, %c0_18] : memref<1x1x128xf32, #tpu.memory_space<vmem>>, vector<1x1x64xf32>
    %26 = vector.shape_cast %25 : vector<1x1x64xf32> to vector<1x64xf32>
    %27 = vector.shape_cast %24 : vector<1x64xf32> to vector<1x1x64xf32>
    tpu.vector_store %arg7[%c0_16, %c0_17, %c0_18], %27 {strides = array<i32>} : memref<1x1x128xf32, #tpu.memory_space<vmem>>, vector<1x1x64xf32>,
    %c64 = arith.constant 64 : index
    %c0_19 = arith.constant 0 : index
    %28 = vector.load %arg1[%c64, %c0_19] : memref<128x16xbf16, #tpu.memory_space<vmem>>, vector<64x16xbf16>
    %c0_20 = arith.constant 0 : index
    %c0_21 = arith.constant 0 : index
    %29 = vector.load %arg2[%c0_20, %c0_21] : memref<16x32xbf16, #tpu.memory_space<vmem>>, vector<16x32xbf16>
    %cst_22 = arith.constant dense<0.000000e+00> : vector<64x32xf32>
    %30 = tpu.matmul %28, %29, %cst_22 {dimension_numbers = #tpu.dot_dimension_numbers<[1], [0], [0], [1], [0, 0, 1, 1], [], []>} : vector<64x16xbf16>, vector<16x32xbf16>, vector<64x32xf32> -> vector<64x32xf32>
    %c0_23 = arith.constant 0 : index
    %c0_24 = arith.constant 0 : index
    %31 = vector.load %arg4[%c0_23, %c0_24] : memref<2x32xf32, #tpu.memory_space<vmem>>, vector<1x32xf32>
    %32 = vector.broadcast %31 : vector<1x32xf32> to vector<64x32xf32>
    %33 = arith.addf %30, %32 : vector<64x32xf32>
    %cst_25 = arith.constant 0.000000e+00 : f32
    %34 = vector.broadcast %cst_25 : f32 to vector<64x32xf32>
    %35 = arith.maximumf %33, %34 : vector<64x32xf32>
    %36 = arith.truncf %35 : vector<64x32xf32> to vector<64x32xbf16>
    %c0_26 = arith.constant 0 : index
    %c0_27 = arith.constant 0 : index
    %37 = vector.load %arg3[%c0_26, %c0_27] : memref<32x32xbf16, #tpu.memory_space<vmem>>, vector<32x32xbf16>
    %cst_28 = arith.constant dense<0.000000e+00> : vector<64x32xf32>
    %38 = tpu.matmul %36, %37, %cst_28 {dimension_numbers = #tpu.dot_dimension_numbers<[1], [0], [0], [1], [0, 0, 1, 1], [], []>} : vector<64x32xbf16>, vector<32x32xbf16>, vector<64x32xf32> -> vector<64x32xf32>
    %c1_29 = arith.constant 1 : index
    %c0_30 = arith.constant 0 : index
    %39 = vector.load %arg4[%c1_29, %c0_30] : memref<2x32xf32, #tpu.memory_space<vmem>>, vector<1x32xf32>
    %40 = vector.broadcast %39 : vector<1x32xf32> to vector<64x32xf32>
    %41 = arith.addf %38, %40 : vector<64x32xf32>
    %cst_31 = arith.constant 0.000000e+00 : f32
    %42 = vector.broadcast %cst_31 : f32 to vector<64x32xf32>
    %43 = arith.maximumf %41, %42 : vector<64x32xf32>
    %44 = vector.broadcast %0 : vector<1x32xf32> to vector<64x32xf32>
    %45 = arith.mulf %43, %44 : vector<64x32xf32>
    %cst_32 = arith.constant dense<0.000000e+00> : vector<64xf32>
    %46 = vector.multi_reduction <add>, %45, %cst_32 [1] : vector<64x32xf32> to vector<64xf32>
    %47 = vector.shape_cast %46 : vector<64xf32> to vector<64x1xf32>
    %48 = vector.broadcast %1 : vector<1x1xf32> to vector<64x1xf32>
    %49 = arith.addf %47, %48 : vector<64x1xf32>
    %50 = tpu.transpose %49, [1, 0] : vector<64x1xf32> -> vector<1x64xf32>
    %c0_33 = arith.constant 0 : index
    %c0_34 = arith.constant 0 : index
    %c64_35 = arith.constant 64 : index
    %51 = vector.load %arg7[%c0_33, %c0_34, %c64_35] : memref<1x1x128xf32, #tpu.memory_space<vmem>>, vector<1x1x64xf32>
    %52 = vector.shape_cast %51 : vector<1x1x64xf32> to vector<1x64xf32>
    %53 = vector.shape_cast %50 : vector<1x64xf32> to vector<1x1x64xf32>
    tpu.vector_store %arg7[%c0_33, %c0_34, %c64_35], %53 {strides = array<i32>} : memref<1x1x128xf32, #tpu.memory_space<vmem>>, vector<1x1x64xf32>,
    return
  }
  func.func @transform_0(%arg0: i32) -> (i32, i32) {
    %c0_i32 = arith.constant 0 : i32
    %c0_i32_0 = arith.constant 0 : i32
    return %arg0, %c0_i32 : i32, i32
  }
  func.func @transform_1(%arg0: i32) -> (i32, i32) {
    %c0_i32 = arith.constant 0 : i32
    %c0_i32_0 = arith.constant 0 : i32
    %c0_i32_1 = arith.constant 0 : i32
    return %c0_i32, %c0_i32_0 : i32, i32
  }
  func.func @transform_2(%arg0: i32) -> (i32, i32) {
    %c0_i32 = arith.constant 0 : i32
    %c0_i32_0 = arith.constant 0 : i32
    %c0_i32_1 = arith.constant 0 : i32
    return %c0_i32, %c0_i32_0 : i32, i32
  }
  func.func @transform_3(%arg0: i32) -> (i32, i32) {
    %c0_i32 = arith.constant 0 : i32
    %c0_i32_0 = arith.constant 0 : i32
    %c0_i32_1 = arith.constant 0 : i32
    return %c0_i32, %c0_i32_0 : i32, i32
  }
  func.func @transform_4(%arg0: i32) -> (i32, i32) {
    %c0_i32 = arith.constant 0 : i32
    %c0_i32_0 = arith.constant 0 : i32
    %c0_i32_1 = arith.constant 0 : i32
    return %c0_i32, %c0_i32_0 : i32, i32
  }
  func.func @transform_5(%arg0: i32) -> (i32, i32) {
    %c0_i32 = arith.constant 0 : i32
    %c0_i32_0 = arith.constant 0 : i32
    %c0_i32_1 = arith.constant 0 : i32
    return %c0_i32, %c0_i32_0 : i32, i32
  }
  func.func @transform_6(%arg0: i32) -> (i32, i32, i32) {
    %c0_i32 = arith.constant 0 : i32
    %c0_i32_0 = arith.constant 0 : i32
    %c0_i32_1 = arith.constant 0 : i32
    return %arg0, %c0_i32, %c0_i32_0 : i32, i32, i32
  }
}

</mosaic_0001>

<llo_original>
// kernel: tpu_custom_call.1
$region0: #{tpu_custom_call.1}
  #allocation0 [shape = 'u32[]', space=smem, size = 0x4, offset = 0x4, fixed_abs, tag = 'smem constant byte address 0x4 - core index']
  #allocation1 [shape = 'u32[144,128]{1,0:T(1,128)}', space=vmem, size = 0x12000, scoped, tag = 'internal scratch']
  #allocation2 [shape = 'f32[1,1]{1,0:T(1,128)S(1)}', space=vmem, size = 0x200, scoped, tag = 'scoped memory for tpu_custom_call.1']
  %s0 = inlined_call_operand.vmem [shape: bf16[256,16], index: 0, kind: input, shape index: {}]
  %s1 = inlined_call_operand.vmem [shape: bf16[16,32], index: 1, kind: input, shape index: {}]
  %s2 = inlined_call_operand.vmem [shape: bf16[32,32], index: 2, kind: input, shape index: {}]
  %s3 = inlined_call_operand.vmem [shape: f32[2,32], index: 3, kind: input, shape index: {}]
  %s4 = inlined_call_operand.vmem [shape: f32[1,32], index: 4, kind: input, shape index: {}]
  %s5 = inlined_call_operand.<no memory space> [shape: f32[1,1], index: 5, kind: input, shape index: {}]
  %s6 = inlined_call_operand.hbm [shape: f32[2,1,128], index: 6, kind: output, shape index: {}]
  %s7 = sld [smem:[#allocation0]]
  $region57: #{tpu_custom_call.1} parent=0
    _
  %s9 = ssub.s32 1, %s7
  %s10 = scalar_select 0, %s9, %s7
  %v11 = vstv %s5
  %12 = vst [vmem:[#allocation2] sm:$0x1] %v11
  $region1: #{tpu_custom_call.1} parent=0
    #allocation3 [shape = 'u8[1024]{0}', space=vmem, size = 0x400, scoped, tag = 'output window, operand 0']
    #allocation4 [shape = 's32[2]{0}', space=sflag, size = 0x8, scoped, tag = 'scoped memory for tpu_custom_call.1']
    %13 = vsyncpa [#allocation4], 0
    %s14 = scalar_lea.sflag [#allocation4], 1
    %15 = vsyncpa %s14, 0
    loop: start=0, step=1, limit=4
    $region2: #{tpu_custom_call.1} parent=1 // loop_pre_header
      _
    $region3: #{tpu_custom_call.1} parent=1 // loop_header
      %s17 = sphi 0, %s21
      %p18 = scmp.ge.s32.totalorder %s17, 4
      %s27 = sphi 0, %s29
      %s30 = sphi 0, %s27
      %s31 = sphi 0, %s30
      %s47 = sphi 0, %s31
      %s51 = sphi 0, %s51
      %s53 = sphi 0, %s51
      %s54 = sphi 0, %s53
      %s68 = sphi 0, %s54
      %s72 = sphi 0, %s72
      %s74 = sphi 0, %s72
      %s75 = sphi 0, %s74
      %s89 = sphi 0, %s75
      %s93 = sphi 0, %s93
      %s95 = sphi 0, %s93
      %s96 = sphi 0, %s95
      %s110 = sphi 0, %s96
      %s114 = sphi 0, %s114
      %s116 = sphi 0, %s114
      %s117 = sphi 0, %s116
      %s131 = sphi 0, %s117
      %s135 = sphi 0, %s135
      %s137 = sphi 0, %s135
      %s138 = sphi 0, %s137
      %s152 = sphi 0, %s138
      %s158 = sphi 0, %s160
      %s161 = sphi 0, %s158
      %s162 = sphi 0, %s161
      %s178 = sphi 0, %s162
    $region4: #{tpu_custom_call.1} parent=1 // loop_header_branch
      %20 = sbr.rel (%p18) target = $region8
    $region5: #{tpu_custom_call.1} parent=1 // loop_body
      %s22 = ssub.s32 %s17, 1
      %s23 = ssub.s32 %s17, 2
      %s24 = sadd.s32 %s17, 1
      %s25 = ssub.s32 %s17, %s24
      %p26 = scmp.eq.s32.totalorder %s25, 0
      %s28 = sadd.s32 %s27, 1
      %s29 = scalar_select %p26, %s27, %s28
      %p32 = pneg %p26
      %p33 = scmp.eq.s32.totalorder %s17, 1
      %p34 = por %p32, %p33
      %p35 = scmp.ne.s32.totalorder %s27, %s30
      %p36 = scmp.eq.s32.totalorder %s17, 0
      %p37 = por %p35, %p36
      %p38 = scmp.ne.s32.totalorder %s27, %s30
      %p39 = scmp.eq.s32.totalorder %s22, 1
      %p40 = por %p38, %p39
      %p41 = scmp.ne.s32.totalorder %s30, %s31
      %p42 = scmp.eq.s32.totalorder %s22, 0
      %p43 = por %p41, %p42
      %p44 = scmp.ne.s32.totalorder %s30, %s31
      %p45 = scmp.eq.s32.totalorder %s23, 1
      %p46 = por %p44, %p45
      %p48 = scmp.ne.s32.totalorder %s31, %s47
      %p49 = scmp.eq.s32.totalorder %s23, 0
      %p50 = por %p48, %p49
      %s52 = sadd.s32 %s51, 1
      %p55 = scmp.eq.s32.totalorder %s17, 1
      %p56 = scmp.ne.s32.totalorder %s51, %s53
      %p57 = scmp.eq.s32.totalorder %s17, 0
      %p58 = por %p56, %p57
      %p59 = scmp.ne.s32.totalorder %s51, %s53
      %p60 = scmp.eq.s32.totalorder %s22, 1
      %p61 = por %p59, %p60
      %p62 = scmp.ne.s32.totalorder %s53, %s54
      %p63 = scmp.eq.s32.totalorder %s22, 0
      %p64 = por %p62, %p63
      %p65 = scmp.ne.s32.totalorder %s53, %s54
      %p66 = scmp.eq.s32.totalorder %s23, 1
      %p67 = por %p65, %p66
      %p69 = scmp.ne.s32.totalorder %s54, %s68
      %p70 = scmp.eq.s32.totalorder %s23, 0
      %p71 = por %p69, %p70
      %s73 = sadd.s32 %s72, 1
      %p76 = scmp.eq.s32.totalorder %s17, 1
      %p77 = scmp.ne.s32.totalorder %s72, %s74
      %p78 = scmp.eq.s32.totalorder %s17, 0
      %p79 = por %p77, %p78
      %p80 = scmp.ne.s32.totalorder %s72, %s74
      %p81 = scmp.eq.s32.totalorder %s22, 1
      %p82 = por %p80, %p81
      %p83 = scmp.ne.s32.totalorder %s74, %s75
      %p84 = scmp.eq.s32.totalorder %s22, 0
      %p85 = por %p83, %p84
      %p86 = scmp.ne.s32.totalorder %s74, %s75
      %p87 = scmp.eq.s32.totalorder %s23, 1
      %p88 = por %p86, %p87
      %p90 = scmp.ne.s32.totalorder %s75, %s89
      %p91 = scmp.eq.s32.totalorder %s23, 0
      %p92 = por %p90, %p91
      %s94 = sadd.s32 %s93, 1
      %p97 = scmp.eq.s32.totalorder %s17, 1
      %p98 = scmp.ne.s32.totalorder %s93, %s95
      %p99 = scmp.eq.s32.totalorder %s17, 0
      %p100 = por %p98, %p99
      %p101 = scmp.ne.s32.totalorder %s93, %s95
      %p102 = scmp.eq.s32.totalorder %s22, 1
      %p103 = por %p101, %p102
      %p104 = scmp.ne.s32.totalorder %s95, %s96
      %p105 = scmp.eq.s32.totalorder %s22, 0
      %p106 = por %p104, %p105
      %p107 = scmp.ne.s32.totalorder %s95, %s96
      %p108 = scmp.eq.s32.totalorder %s23, 1
      %p109 = por %p107, %p108
      %p111 = scmp.ne.s32.totalorder %s96, %s110
      %p112 = scmp.eq.s32.totalorder %s23, 0
      %p113 = por %p111, %p112
      %s115 = sadd.s32 %s114, 1
      %p118 = scmp.eq.s32.totalorder %s17, 1
      %p119 = scmp.ne.s32.totalorder %s114, %s116
      %p120 = scmp.eq.s32.totalorder %s17, 0
      %p121 = por %p119, %p120
      %p122 = scmp.ne.s32.totalorder %s114, %s116
      %p123 = scmp.eq.s32.totalorder %s22, 1
      %p124 = por %p122, %p123
      %p125 = scmp.ne.s32.totalorder %s116, %s117
      %p126 = scmp.eq.s32.totalorder %s22, 0
      %p127 = por %p125, %p126
      %p128 = scmp.ne.s32.totalorder %s116, %s117
      %p129 = scmp.eq.s32.totalorder %s23, 1
      %p130 = por %p128, %p129
      %p132 = scmp.ne.s32.totalorder %s117, %s131
      %p133 = scmp.eq.s32.totalorder %s23, 0
      %p134 = por %p132, %p133
      %s136 = sadd.s32 %s135, 1
      %p139 = scmp.eq.s32.totalorder %s17, 1
      %p140 = scmp.ne.s32.totalorder %s135, %s137
      %p141 = scmp.eq.s32.totalorder %s17, 0
      %p142 = por %p140, %p141
      %p143 = scmp.ne.s32.totalorder %s135, %s137
      %p144 = scmp.eq.s32.totalorder %s22, 1
      %p145 = por %p143, %p144
      %p146 = scmp.ne.s32.totalorder %s137, %s138
      %p147 = scmp.eq.s32.totalorder %s22, 0
      %p148 = por %p146, %p147
      %p149 = scmp.ne.s32.totalorder %s137, %s138
      %p150 = scmp.eq.s32.totalorder %s23, 1
      %p151 = por %p149, %p150
      %p153 = scmp.ne.s32.totalorder %s138, %s152
      %p154 = scmp.eq.s32.totalorder %s23, 0
      %p155 = por %p153, %p154
      %s156 = ssub.s32 %s17, %s24
      %p157 = scmp.eq.s32.totalorder %s156, 0
      %s159 = sadd.s32 %s158, 1
      %s160 = scalar_select %p157, %s158, %s159
      %p163 = pneg %p157
      %p164 = scmp.eq.s32.totalorder %s17, 1
      %p165 = por %p163, %p164
      %p166 = scmp.ne.s32.totalorder %s158, %s161
      %p167 = scmp.eq.s32.totalorder %s17, 0
      %p168 = por %p166, %p167
      %p169 = scmp.ne.s32.totalorder %s158, %s161
      %p170 = scmp.eq.s32.totalorder %s22, 1
      %p171 = por %p169, %p170
      %p172 = scmp.ne.s32.totalorder %s161, %s162
      %p173 = scmp.eq.s32.totalorder %s22, 0
      %p174 = por %p172, %p173
      %p175 = scmp.ne.s32.totalorder %s161, %s162
      %p176 = scmp.eq.s32.totalorder %s23, 1
      %p177 = por %p175, %p176
      %p179 = scmp.ne.s32.totalorder %s162, %s178
      %p180 = scmp.eq.s32.totalorder %s23, 0
      %p181 = por %p179, %p180
      %p182 = scmp.le.s32.totalorder 1, %s17
      %p183 = scmp.lt.s32.totalorder %s17, 3
      %p184 = pnand %p182, %p183
      %p185 = pneg %p184
      // Predicated region
      $region9: #{tpu_custom_call.1} parent=5 // pred_check
        _
      $region10: #{tpu_custom_call.1} parent=5 // pred_check_branch
        %187 = sbr.rel (%p184) target = $region12
      $region11: #{tpu_custom_call.1} parent=5 // pred_region
        %s188 = ssub.s32 %s17, 1
        // Predicated region
        $region13: #{tpu_custom_call.1} parent=11 // pred_check
          %p189 = pneg %p64
        $region14: #{tpu_custom_call.1} parent=11 // pred_check_branch
          %191 = sbr.rel (%p189) target = $region16
        $region15: #{tpu_custom_call.1} parent=11 // pred_region
          _
        $region16: #{tpu_custom_call.1} parent=11 // pred_fallthru
          _
        // Predicated region
        $region17: #{tpu_custom_call.1} parent=11 // pred_check
          %p192 = pneg %p85
        $region18: #{tpu_custom_call.1} parent=11 // pred_check_branch
          %194 = sbr.rel (%p192) target = $region20
        $region19: #{tpu_custom_call.1} parent=11 // pred_region
          _
        $region20: #{tpu_custom_call.1} parent=11 // pred_fallthru
          _
        // Predicated region
        $region21: #{tpu_custom_call.1} parent=11 // pred_check
          %p195 = pneg %p106
        $region22: #{tpu_custom_call.1} parent=11 // pred_check_branch
          %197 = sbr.rel (%p195) target = $region24
        $region23: #{tpu_custom_call.1} parent=11 // pred_region
          _
        $region24: #{tpu_custom_call.1} parent=11 // pred_fallthru
          _
        // Predicated region
        $region25: #{tpu_custom_call.1} parent=11 // pred_check
          %p198 = pneg %p127
        $region26: #{tpu_custom_call.1} parent=11 // pred_check_branch
          %200 = sbr.rel (%p198) target = $region28
        $region27: #{tpu_custom_call.1} parent=11 // pred_region
          _
        $region28: #{tpu_custom_call.1} parent=11 // pred_fallthru
          _
        // Predicated region
        $region29: #{tpu_custom_call.1} parent=11 // pred_check
          %p201 = pneg %p148
        $region30: #{tpu_custom_call.1} parent=11 // pred_check_branch
          %203 = sbr.rel (%p201) target = $region32
        $region31: #{tpu_custom_call.1} parent=11 // pred_region
          _
        $region32: #{tpu_custom_call.1} parent=11 // pred_fallthru
          _
      $region12: #{tpu_custom_call.1} parent=5 // pred_fallthru
        _
      %p204 = scmp.lt.s32.totalorder %s17, 2
      // Predicated region
      $region33: #{tpu_custom_call.1} parent=5 // pred_check
        %p205 = pneg %p204
      $region34: #{tpu_custom_call.1} parent=5 // pred_check_branch
        %207 = sbr.rel (%p205) target = $region36
      $region35: #{tpu_custom_call.1} parent=5 // pred_region
        // Predicated region
        $region37: #{tpu_custom_call.1} parent=35 // pred_check
          %p208 = pneg %p37
        $region38: #{tpu_custom_call.1} parent=35 // pred_check_branch
          %210 = sbr.rel (%p208) target = $region40
        $region39: #{tpu_custom_call.1} parent=35 // pred_region
          %s211 = smul.u32 16, %s17
          %p212 = scmp.lt.s32.totalorder %s211, 31
          %s213 = scalar_select %p212, %s211, 31
          %s214 = smul.addr %s213, 4
          %s215 = scalar_lea.vmem %s0, %s214
          %s216 = smul.u32 16, %s17
        $region40: #{tpu_custom_call.1} parent=35 // pred_fallthru
          _
      $region36: #{tpu_custom_call.1} parent=5 // pred_fallthru
        _
      %p217 = scmp.le.s32.totalorder 1, %s17
      %p218 = scmp.lt.s32.totalorder %s17, 3
      %p219 = pnand %p217, %p218
      %p220 = pneg %p219
      // Predicated region
      $region41: #{tpu_custom_call.1} parent=5 // pred_check
        _
      $region42: #{tpu_custom_call.1} parent=5 // pred_check_branch
        %222 = sbr.rel (%p219) target = $region44
      $region43: #{tpu_custom_call.1} parent=5 // pred_region
        %s223 = ssub.s32 %s17, 1
        %s224 = smul.u32 16, %s22
        %p225 = scmp.lt.s32.totalorder %s224, 31
        %s226 = scalar_select %p225, %s224, 31
        %s227 = smul.addr %s226, 4
        %s228 = scalar_lea.vmem %s0, %s227
        %p229 = pneg %p43
        %p230 = pneg %p40
        %p231 = pneg %p64
        %p232 = pneg %p61
        %p233 = pneg %p85
        %p234 = pneg %p82
        %p235 = pneg %p106
        %p236 = pneg %p103
        %p237 = pneg %p127
        %p238 = pneg %p124
        %p239 = pneg %p148
        %p240 = pneg %p145
        %p241 = pneg %p174
        %p242 = pneg %p171
        %s243 = sand.u32 %s161, 1
        %s244 = scalar_lea.sflag [#allocation4], %s243
        %s245 = sand.u32 %s161, 1
        %s246 = scalar_lea.vmem [#allocation3], %s245
        %s247 = smul.u32 16, %s22
        %p248 = scmp.lt.s32.totalorder %s247, 31
        %s249 = scalar_select %p248, %s247, 31
        %s250 = smul.addr %s249, 4
        %s251 = scalar_lea.vmem %s0, %s250
        %s252 = smul.u32 16, %s22
        %v254 = vld [vmem:[%s4] sm:$0x1]
        %v255 = vld [vmem:[#allocation2] sm:$0x1]
        %v256 = vld [vmem:[%s251] sm:$0xf]
        %v257 = vld [vmem:[%s251 + $0x4] sm:$0xf]
        %v258 = vld [vmem:[%s251 + $0x8] sm:$0xf]
        %v259 = vld [vmem:[%s251 + $0xc] sm:$0xf]
        %v260 = vld [vmem:[%s251 + $0x10] sm:$0xf]
        %v261 = vld [vmem:[%s251 + $0x14] sm:$0xf]
        %v262 = vld [vmem:[%s251 + $0x18] sm:$0xf]
        %v263 = vld [vmem:[%s251 + $0x1c] sm:$0xf]
        %v264 = vld [vmem:[%s1] sm:$0xf]
        %v265 = vld [vmem:[%s1 + $0x4] sm:$0xf]
        %v266 = vld [vmem:[%s3] sm:$0x1]
        %v267 = vlaneseq
        %v268 = vshrl.u32 %v267, 7
        %v269 = vsub.s32 0, %v268
        %v270 = vrot.slane %v266, %v269
        %v279 = vunpack.c.l.b16 %v256
        %v280 = vunpack.c.l.b16 %v257
        %v281 = vunpack.c.l.b16 %v258
        %v282 = vunpack.c.l.b16 %v259
        %v283 = vunpack.c.l.b16 %v260
        %v284 = vunpack.c.l.b16 %v261
        %v285 = vunpack.c.l.b16 %v262
        %v286 = vunpack.c.l.b16 %v263
        %v287 = vpack.c.b16 %v280, %v279
        %v288 = vpack.c.b16 %v282, %v281
        %v289 = vpack.c.b16 %v284, %v283
        %v290 = vpack.c.b16 %v286, %v285
        %v293 = vunpack.c.l.b16 %v264
        %v294 = vunpack.c.l.b16 %v265
        %v295 = vpack.c.b16 %v294, %v293
        %vm297 = vcmask 130048
        %v299 = vsel %vm297, %v287, 0
        %v302 = vsel %vm297, %v288, 0
        %v305 = vsel %vm297, %v289, 0
        %v308 = vsel %vm297, %v290, 0
        %310 = vmatprep.subr.bf16.mxu0 0
        %311 = vmatpush1.bf16.msra.mxu0 %v295
        %312 = vmatprep.subr.bf16.mxu0 0
        %313 = vmatpush1.bf16.msra.mxu0 0
        %314 = vmatprep.subr.bf16.mxu0 0
        %315 = vmatpush1.bf16.msra.mxu0 0
        %316 = vmatprep.subr.bf16.mxu0 0
        %317 = vmatpush1.bf16.msra.mxu0 0
        %318 = vmatprep.subr.bf16.mxu0 0
        %319 = vmatpush1.bf16.msra.mxu0 0
        %320 = vmatprep.subr.bf16.mxu0 0
        %321 = vmatpush1.bf16.msra.mxu0 0
        %322 = vmatprep.subr.bf16.mxu0 0
        %323 = vmatpush1.bf16.msra.mxu0 0
        %324 = vmatprep.subr.bf16.mxu0 0
        %325 = vmatpush1.bf16.msra.mxu0 0
        %326 = vmatprep.subr.bf16.mxu0 0
        %327 = vmatpush1.bf16.msra.mxu0 0
        %328 = vmatprep.subr.bf16.mxu0 0
        %329 = vmatpush1.bf16.msra.mxu0 0
        %330 = vmatprep.subr.bf16.mxu0 0
        %331 = vmatpush1.bf16.msra.mxu0 0
        %332 = vmatprep.subr.bf16.mxu0 0
        %333 = vmatpush1.bf16.msra.mxu0 0
        %334 = vmatprep.subr.bf16.mxu0 0
        %335 = vmatpush1.bf16.msra.mxu0 0
        %336 = vmatprep.subr.bf16.mxu0 0
        %337 = vmatpush1.bf16.msra.mxu0 0
        %338 = vmatprep.subr.bf16.mxu0 0
        %339 = vmatpush1.bf16.msra.mxu0 0
        %340 = vmatprep.subr.bf16.mxu0 0
        %341 = vmatpush1.bf16.msra.mxu0 0
        %342 = vmatprep.mubr.bf16.mxu0 0
        %343 = vmatmul.mubr.bf16.gmra.mrb[0].mxu0 %v299
        %v344 = vpop.f32.mrb[0].mxu0
        %v345 = vadd.f32 %v270, %v344
        %v346 = vpop.f32.mrb[0].mxu0
        %v347 = vpop.f32.mrb[0].mxu0
        %v348 = vadd.f32 %v270, %v347
        %v349 = vpop.f32.mrb[0].mxu0
        %350 = vmatprep.mubr.bf16.mxu0 0
        %351 = vmatmul.mubr.bf16.gmra.mrb[0].mxu0 %v302
        %v352 = vpop.f32.mrb[0].mxu0
        %v353 = vadd.f32 %v270, %v352
        %v354 = vpop.f32.mrb[0].mxu0
        %v355 = vpop.f32.mrb[0].mxu0
        %v356 = vadd.f32 %v270, %v355
        %v357 = vpop.f32.mrb[0].mxu0
        %358 = vmatprep.mubr.bf16.mxu0 0
        %359 = vmatmul.mubr.bf16.gmra.mrb[0].mxu0 %v305
        %v360 = vpop.f32.mrb[0].mxu0
        %v361 = vadd.f32 %v270, %v360
        %v362 = vpop.f32.mrb[0].mxu0
        %v363 = vpop.f32.mrb[0].mxu0
        %v364 = vadd.f32 %v270, %v363
        %v365 = vpop.f32.mrb[0].mxu0
        %366 = vmatprep.mubr.bf16.mxu0 0
        %367 = vmatmul.mubr.bf16.gmra.mrb[0].mxu0 %v308
        %v368 = vpop.f32.mrb[0].mxu0
        %v369 = vadd.f32 %v270, %v368
        %v370 = vpop.f32.mrb[0].mxu0
        %v371 = vpop.f32.mrb[0].mxu0
        %v372 = vadd.f32 %v270, %v371
        %v373 = vpop.f32.mrb[0].mxu0
        %374 = vdwg.mxu0
        %v375 = vmax.f32 %v345, 0.0
        %v376 = vmax.f32 %v348, 0.0
        %v377 = vmax.f32 %v353, 0.0
        %v378 = vmax.f32 %v356, 0.0
        %v379 = vmax.f32 %v361, 0.0
        %v380 = vmax.f32 %v364, 0.0
        %v381 = vmax.f32 %v369, 0.0
        %v382 = vmax.f32 %v372, 0.0
        %v383 = vpack.c.bf16 %v376, %v375
        %v384 = vpack.c.bf16 %v378, %v377
        %v385 = vpack.c.bf16 %v380, %v379
        %v386 = vpack.c.bf16 %v382, %v381
        %v387 = vld [vmem:[%s2] sm:$0xf]
        %v388 = vld [vmem:[%s2 + $0x4] sm:$0xf]
        %v389 = vld [vmem:[%s2 + $0x8] sm:$0xf]
        %v390 = vld [vmem:[%s2 + $0xc] sm:$0xf]
        %v391 = vld [vmem:[%s3 + $0x1] sm:$0x1]
        %v392 = vlaneseq
        %v393 = vshrl.u32 %v392, 7
        %v394 = vsub.s32 0, %v393
        %v395 = vrot.slane %v391, %v394
        %v400 = vunpack.c.l.b16 %v387
        %v401 = vunpack.c.l.b16 %v388
        %v402 = vunpack.c.l.b16 %v389
        %v403 = vunpack.c.l.b16 %v390
        %v404 = vpack.c.b16 %v401, %v400
        %v405 = vpack.c.b16 %v403, %v402
        %vm408 = vcmask 261120
        %v410 = vsel %vm408, %v383, 0
        %v413 = vsel %vm408, %v384, 0
        %v416 = vsel %vm408, %v385, 0
        %v419 = vsel %vm408, %v386, 0
        %421 = vmatprep.subr.bf16.mxu0 0
        %422 = vmatpush1.bf16.msra.mxu0 %v404
        %423 = vmatprep.subr.bf16.mxu0 0
        %424 = vmatpush1.bf16.msra.mxu0 %v405
        %425 = vmatprep.subr.bf16.mxu0 0
        %426 = vmatpush1.bf16.msra.mxu0 0
        %427 = vmatprep.subr.bf16.mxu0 0
        %428 = vmatpush1.bf16.msra.mxu0 0
        %429 = vmatprep.subr.bf16.mxu0 0
        %430 = vmatpush1.bf16.msra.mxu0 0
        %431 = vmatprep.subr.bf16.mxu0 0
        %432 = vmatpush1.bf16.msra.mxu0 0
        %433 = vmatprep.subr.bf16.mxu0 0
        %434 = vmatpush1.bf16.msra.mxu0 0
        %435 = vmatprep.subr.bf16.mxu0 0
        %436 = vmatpush1.bf16.msra.mxu0 0
        %437 = vmatprep.subr.bf16.mxu0 0
        %438 = vmatpush1.bf16.msra.mxu0 0
        %439 = vmatprep.subr.bf16.mxu0 0
        %440 = vmatpush1.bf16.msra.mxu0 0
        %441 = vmatprep.subr.bf16.mxu0 0
        %442 = vmatpush1.bf16.msra.mxu0 0
        %443 = vmatprep.subr.bf16.mxu0 0
        %444 = vmatpush1.bf16.msra.mxu0 0
        %445 = vmatprep.subr.bf16.mxu0 0
        %446 = vmatpush1.bf16.msra.mxu0 0
        %447 = vmatprep.subr.bf16.mxu0 0
        %448 = vmatpush1.bf16.msra.mxu0 0
        %449 = vmatprep.subr.bf16.mxu0 0
        %450 = vmatpush1.bf16.msra.mxu0 0
        %451 = vmatprep.subr.bf16.mxu0 0
        %452 = vmatpush1.bf16.msra.mxu0 0
        %453 = vmatprep.mubr.bf16.mxu0 0
        %454 = vmatmul.mubr.bf16.gmra.mrb[0].mxu0 %v410
        %v455 = vpop.f32.mrb[0].mxu0
        %v456 = vadd.f32 %v395, %v455
        %v457 = vpop.f32.mrb[0].mxu0
        %v458 = vpop.f32.mrb[0].mxu0
        %v459 = vadd.f32 %v395, %v458
        %v460 = vpop.f32.mrb[0].mxu0
        %461 = vmatprep.mubr.bf16.mxu0 0
        %462 = vmatmul.mubr.bf16.gmra.mrb[0].mxu0 %v413
        %v463 = vpop.f32.mrb[0].mxu0
        %v464 = vadd.f32 %v395, %v463
        %v465 = vpop.f32.mrb[0].mxu0
        %v466 = vpop.f32.mrb[0].mxu0
        %v467 = vadd.f32 %v395, %v466
        %v468 = vpop.f32.mrb[0].mxu0
        %469 = vmatprep.mubr.bf16.mxu0 0
        %470 = vmatmul.mubr.bf16.gmra.mrb[0].mxu0 %v416
        %v471 = vpop.f32.mrb[0].mxu0
        %v472 = vadd.f32 %v395, %v471
        %v473 = vpop.f32.mrb[0].mxu0
        %v474 = vpop.f32.mrb[0].mxu0
        %v475 = vadd.f32 %v395, %v474
        %v476 = vpop.f32.mrb[0].mxu0
        %477 = vmatprep.mubr.bf16.mxu0 0
        %478 = vmatmul.mubr.bf16.gmra.mrb[0].mxu0 %v419
        %v479 = vpop.f32.mrb[0].mxu0
        %v480 = vadd.f32 %v395, %v479
        %v481 = vpop.f32.mrb[0].mxu0
        %v482 = vpop.f32.mrb[0].mxu0
        %v483 = vadd.f32 %v395, %v482
        %v484 = vpop.f32.mrb[0].mxu0
        %485 = vdwg.mxu0
        %v486 = vmax.f32 %v456, 0.0
        %v487 = vmax.f32 %v459, 0.0
        %v488 = vmax.f32 %v464, 0.0
        %v489 = vmax.f32 %v467, 0.0
        %v490 = vmax.f32 %v472, 0.0
        %v491 = vmax.f32 %v475, 0.0
        %v492 = vmax.f32 %v480, 0.0
        %v493 = vmax.f32 %v483, 0.0
        %v495 = vlaneseq
        %v496 = vshrl.u32 %v495, 7
        %v497 = vsub.s32 0, %v496
        %v498 = vrot.slane %v254, %v497
        %v500 = vmul.f32 %v486, %v498
        %v501 = vmul.f32 %v487, %v498
        %v502 = vmul.f32 %v488, %v498
        %v503 = vmul.f32 %v489, %v498
        %v504 = vmul.f32 %v490, %v498
        %v505 = vmul.f32 %v491, %v498
        %v506 = vmul.f32 %v492, %v498
        %v507 = vmul.f32 %v493, %v498
        %v508 = vsel %vm408, %v500, 0.0
        %509 = vadd.xlane.f32.xlu0 %v508
        %v510 = vpop.xlane.xlu0 %509
        %v511 = vsel %vm408, %v501, 0.0
        %512 = vadd.xlane.f32.xlu0 %v511
        %v513 = vpop.xlane.xlu0 %512
        %v514 = vsel %vm408, %v502, 0.0
        %515 = vadd.xlane.f32.xlu0 %v514
        %v516 = vpop.xlane.xlu0 %515
        %v517 = vsel %vm408, %v503, 0.0
        %518 = vadd.xlane.f32.xlu0 %v517
        %v519 = vpop.xlane.xlu0 %518
        %v520 = vsel %vm408, %v504, 0.0
        %521 = vadd.xlane.f32.xlu0 %v520
        %v522 = vpop.xlane.xlu0 %521
        %v523 = vsel %vm408, %v505, 0.0
        %524 = vadd.xlane.f32.xlu0 %v523
        %v525 = vpop.xlane.xlu0 %524
        %v526 = vsel %vm408, %v506, 0.0
        %527 = vadd.xlane.f32.xlu0 %v526
        %v528 = vpop.xlane.xlu0 %527
        %v529 = vsel %vm408, %v507, 0.0
        %530 = vadd.xlane.f32.xlu0 %v529
        %v531 = vpop.xlane.xlu0 %530
        %v533 = vlaneseq
        %v534 = vshrl.u32 %v533, 7
        %v535 = vsub.s32 0, %v534
        %v536 = vrot.slane %v255, %v535
        %v538 = vadd.f32 %v510, %v536
        %v539 = vadd.f32 %v513, %v536
        %v540 = vadd.f32 %v516, %v536
        %v541 = vadd.f32 %v519, %v536
        %v542 = vadd.f32 %v522, %v536
        %v543 = vadd.f32 %v525, %v536
        %v544 = vadd.f32 %v528, %v536
        %v545 = vadd.f32 %v531, %v536
        %546 = vxpose.xlu0.b32.start [1/16] %v538, 128
        %547 = vxpose.xlu0.b32.cont [2/16] %v539, 128
        %548 = vxpose.xlu0.b32.cont [3/16] %v540, 128
        %549 = vxpose.xlu0.b32.cont [4/16] %v541, 128
        %550 = vxpose.xlu0.b32.cont [5/16] %v542, 128
        %551 = vxpose.xlu0.b32.cont [6/16] %v543, 128
        %552 = vxpose.xlu0.b32.cont [7/16] %v544, 128
        %553 = vxpose.xlu0.b32.cont [8/16] %v545, 128
        %554 = vxpose.xlu0.b32.cont [9/16] 0.0, 128
        %555 = vxpose.xlu0.b32.cont [10/16] 0.0, 128
        %556 = vxpose.xlu0.b32.cont [11/16] 0.0, 128
        %557 = vxpose.xlu0.b32.cont [12/16] 0.0, 128
        %558 = vxpose.xlu0.b32.cont [13/16] 0.0, 128
        %559 = vxpose.xlu0.b32.cont [14/16] 0.0, 128
        %560 = vxpose.xlu0.b32.cont [15/16] 0.0, 128
        %561 = vxpose.xlu0.b32.end [16/16] 0.0, 128
        %v562 = vpop.trf.xlu0
        %v563 = vpop.trf.xlu0
        %v564 = vpop.trf.xlu0
        %v565 = vpop.trf.xlu0
        %v566 = vpop.trf.xlu0
        %v567 = vpop.trf.xlu0
        %v568 = vpop.trf.xlu0
        %v569 = vpop.trf.xlu0
        %v570 = vpop.trf.xlu0
        %v571 = vpop.trf.xlu0
        %v572 = vpop.trf.xlu0
        %v573 = vpop.trf.xlu0
        %v574 = vpop.trf.xlu0
        %v575 = vpop.trf.xlu0
        %v576 = vpop.trf.xlu0
        %v577 = vpop.trf.xlu0
        %vm578 = vcmask 516096
        %579 = vst.msk [vmem:[%s246] sm:$0x1] %vm578, %v562
        %v580 = vld [vmem:[%s251 + $0x20] sm:$0xf]
        %v581 = vld [vmem:[%s251 + $0x24] sm:$0xf]
        %v582 = vld [vmem:[%s251 + $0x28] sm:$0xf]
        %v583 = vld [vmem:[%s251 + $0x2c] sm:$0xf]
        %v584 = vld [vmem:[%s251 + $0x30] sm:$0xf]
        %v585 = vld [vmem:[%s251 + $0x34] sm:$0xf]
        %v586 = vld [vmem:[%s251 + $0x38] sm:$0xf]
        %v587 = vld [vmem:[%s251 + $0x3c] sm:$0xf]
        %v588 = vld [vmem:[%s1] sm:$0xf]
        %v589 = vld [vmem:[%s1 + $0x4] sm:$0xf]
        %v590 = vld [vmem:[%s3] sm:$0x1]
        %v591 = vlaneseq
        %v592 = vshrl.u32 %v591, 7
        %v593 = vsub.s32 0, %v592
        %v594 = vrot.slane %v590, %v593
        %v603 = vunpack.c.l.b16 %v580
        %v604 = vunpack.c.l.b16 %v581
        %v605 = vunpack.c.l.b16 %v582
        %v606 = vunpack.c.l.b16 %v583
        %v607 = vunpack.c.l.b16 %v584
        %v608 = vunpack.c.l.b16 %v585
        %v609 = vunpack.c.l.b16 %v586
        %v610 = vunpack.c.l.b16 %v587
        %v611 = vpack.c.b16 %v604, %v603
        %v612 = vpack.c.b16 %v606, %v605
        %v613 = vpack.c.b16 %v608, %v607
        %v614 = vpack.c.b16 %v610, %v609
        %v617 = vunpack.c.l.b16 %v588
        %v618 = vunpack.c.l.b16 %v589
        %v619 = vpack.c.b16 %v618, %v617
        %v622 = vsel %vm297, %v611, 0
        %v625 = vsel %vm297, %v612, 0
        %v628 = vsel %vm297, %v613, 0
        %v631 = vsel %vm297, %v614, 0
        %633 = vmatprep.subr.bf16.mxu0 0
        %634 = vmatpush1.bf16.msra.mxu0 %v619
        %635 = vmatprep.subr.bf16.mxu0 0
        %636 = vmatpush1.bf16.msra.mxu0 0
        %637 = vmatprep.subr.bf16.mxu0 0
        %638 = vmatpush1.bf16.msra.mxu0 0
        %639 = vmatprep.subr.bf16.mxu0 0
        %640 = vmatpush1.bf16.msra.mxu0 0
        %641 = vmatprep.subr.bf16.mxu0 0
        %642 = vmatpush1.bf16.msra.mxu0 0
        %643 = vmatprep.subr.bf16.mxu0 0
        %644 = vmatpush1.bf16.msra.mxu0 0
        %645 = vmatprep.subr.bf16.mxu0 0
        %646 = vmatpush1.bf16.msra.mxu0 0
        %647 = vmatprep.subr.bf16.mxu0 0
        %648 = vmatpush1.bf16.msra.mxu0 0
        %649 = vmatprep.subr.bf16.mxu0 0
        %650 = vmatpush1.bf16.msra.mxu0 0
        %651 = vmatprep.subr.bf16.mxu0 0
        %652 = vmatpush1.bf16.msra.mxu0 0
        %653 = vmatprep.subr.bf16.mxu0 0
        %654 = vmatpush1.bf16.msra.mxu0 0
        %655 = vmatprep.subr.bf16.mxu0 0
        %656 = vmatpush1.bf16.msra.mxu0 0
        %657 = vmatprep.subr.bf16.mxu0 0
        %658 = vmatpush1.bf16.msra.mxu0 0
        %659 = vmatprep.subr.bf16.mxu0 0
        %660 = vmatpush1.bf16.msra.mxu0 0
        %661 = vmatprep.subr.bf16.mxu0 0
        %662 = vmatpush1.bf16.msra.mxu0 0
        %663 = vmatprep.subr.bf16.mxu0 0
        %664 = vmatpush1.bf16.msra.mxu0 0
        %665 = vmatprep.mubr.bf16.mxu0 0
        %666 = vmatmul.mubr.bf16.gmra.mrb[0].mxu0 %v622
        %v667 = vpop.f32.mrb[0].mxu0
        %v668 = vadd.f32 %v594, %v667
        %v669 = vpop.f32.mrb[0].mxu0
        %v670 = vpop.f32.mrb[0].mxu0
        %v671 = vadd.f32 %v594, %v670
        %v672 = vpop.f32.mrb[0].mxu0
        %673 = vmatprep.mubr.bf16.mxu0 0
        %674 = vmatmul.mubr.bf16.gmra.mrb[0].mxu0 %v625
        %v675 = vpop.f32.mrb[0].mxu0
        %v676 = vadd.f32 %v594, %v675
        %v677 = vpop.f32.mrb[0].mxu0
        %v678 = vpop.f32.mrb[0].mxu0
        %v679 = vadd.f32 %v594, %v678
        %v680 = vpop.f32.mrb[0].mxu0
        %681 = vmatprep.mubr.bf16.mxu0 0
        %682 = vmatmul.mubr.bf16.gmra.mrb[0].mxu0 %v628
        %v683 = vpop.f32.mrb[0].mxu0
        %v684 = vadd.f32 %v594, %v683
        %v685 = vpop.f32.mrb[0].mxu0
        %v686 = vpop.f32.mrb[0].mxu0
        %v687 = vadd.f32 %v594, %v686
        %v688 = vpop.f32.mrb[0].mxu0
        %689 = vmatprep.mubr.bf16.mxu0 0
        %690 = vmatmul.mubr.bf16.gmra.mrb[0].mxu0 %v631
        %v691 = vpop.f32.mrb[0].mxu0
        %v692 = vadd.f32 %v594, %v691
        %v693 = vpop.f32.mrb[0].mxu0
        %v694 = vpop.f32.mrb[0].mxu0
        %v695 = vadd.f32 %v594, %v694
        %v696 = vpop.f32.mrb[0].mxu0
        %697 = vdwg.mxu0
        %v698 = vmax.f32 %v668, 0.0
        %v699 = vmax.f32 %v671, 0.0
        %v700 = vmax.f32 %v676, 0.0
        %v701 = vmax.f32 %v679, 0.0
        %v702 = vmax.f32 %v684, 0.0
        %v703 = vmax.f32 %v687, 0.0
        %v704 = vmax.f32 %v692, 0.0
        %v705 = vmax.f32 %v695, 0.0
        %v706 = vpack.c.bf16 %v699, %v698
        %v707 = vpack.c.bf16 %v701, %v700
        %v708 = vpack.c.bf16 %v703, %v702
        %v709 = vpack.c.bf16 %v705, %v704
        %v710 = vld [vmem:[%s2] sm:$0xf]
        %v711 = vld [vmem:[%s2 + $0x4] sm:$0xf]
        %v712 = vld [vmem:[%s2 + $0x8] sm:$0xf]
        %v713 = vld [vmem:[%s2 + $0xc] sm:$0xf]
        %v714 = vld [vmem:[%s3 + $0x1] sm:$0x1]
        %v715 = vlaneseq
        %v716 = vshrl.u32 %v715, 7
        %v717 = vsub.s32 0, %v716
        %v718 = vrot.slane %v714, %v717
        %v723 = vunpack.c.l.b16 %v710
        %v724 = vunpack.c.l.b16 %v711
        %v725 = vunpack.c.l.b16 %v712
        %v726 = vunpack.c.l.b16 %v713
        %v727 = vpack.c.b16 %v724, %v723
        %v728 = vpack.c.b16 %v726, %v725
        %v732 = vsel %vm408, %v706, 0
        %v735 = vsel %vm408, %v707, 0
        %v738 = vsel %vm408, %v708, 0
        %v741 = vsel %vm408, %v709, 0
        %743 = vmatprep.subr.bf16.mxu0 0
        %744 = vmatpush1.bf16.msra.mxu0 %v727
        %745 = vmatprep.subr.bf16.mxu0 0
        %746 = vmatpush1.bf16.msra.mxu0 %v728
        %747 = vmatprep.subr.bf16.mxu0 0
        %748 = vmatpush1.bf16.msra.mxu0 0
        %749 = vmatprep.subr.bf16.mxu0 0
        %750 = vmatpush1.bf16.msra.mxu0 0
        %751 = vmatprep.subr.bf16.mxu0 0
        %752 = vmatpush1.bf16.msra.mxu0 0
        %753 = vmatprep.subr.bf16.mxu0 0
        %754 = vmatpush1.bf16.msra.mxu0 0
        %755 = vmatprep.subr.bf16.mxu0 0
        %756 = vmatpush1.bf16.msra.mxu0 0
        %757 = vmatprep.subr.bf16.mxu0 0
        %758 = vmatpush1.bf16.msra.mxu0 0
        %759 = vmatprep.subr.bf16.mxu0 0
        %760 = vmatpush1.bf16.msra.mxu0 0
        %761 = vmatprep.subr.bf16.mxu0 0
        %762 = vmatpush1.bf16.msra.mxu0 0
        %763 = vmatprep.subr.bf16.mxu0 0
        %764 = vmatpush1.bf16.msra.mxu0 0
        %765 = vmatprep.subr.bf16.mxu0 0
        %766 = vmatpush1.bf16.msra.mxu0 0
        %767 = vmatprep.subr.bf16.mxu0 0
        %768 = vmatpush1.bf16.msra.mxu0 0
        %769 = vmatprep.subr.bf16.mxu0 0
        %770 = vmatpush1.bf16.msra.mxu0 0
        %771 = vmatprep.subr.bf16.mxu0 0
        %772 = vmatpush1.bf16.msra.mxu0 0
        %773 = vmatprep.subr.bf16.mxu0 0
        %774 = vmatpush1.bf16.msra.mxu0 0
        %775 = vmatprep.mubr.bf16.mxu0 0
        %776 = vmatmul.mubr.bf16.gmra.mrb[0].mxu0 %v732
        %v777 = vpop.f32.mrb[0].mxu0
        %v778 = vadd.f32 %v718, %v777
        %v779 = vpop.f32.mrb[0].mxu0
        %v780 = vpop.f32.mrb[0].mxu0
        %v781 = vadd.f32 %v718, %v780
        %v782 = vpop.f32.mrb[0].mxu0
        %783 = vmatprep.mubr.bf16.mxu0 0
        %784 = vmatmul.mubr.bf16.gmra.mrb[0].mxu0 %v735
        %v785 = vpop.f32.mrb[0].mxu0
        %v786 = vadd.f32 %v718, %v785
        %v787 = vpop.f32.mrb[0].mxu0
        %v788 = vpop.f32.mrb[0].mxu0
        %v789 = vadd.f32 %v718, %v788
        %v790 = vpop.f32.mrb[0].mxu0
        %791 = vmatprep.mubr.bf16.mxu0 0
        %792 = vmatmul.mubr.bf16.gmra.mrb[0].mxu0 %v738
        %v793 = vpop.f32.mrb[0].mxu0
        %v794 = vadd.f32 %v718, %v793
        %v795 = vpop.f32.mrb[0].mxu0
        %v796 = vpop.f32.mrb[0].mxu0
        %v797 = vadd.f32 %v718, %v796
        %v798 = vpop.f32.mrb[0].mxu0
        %799 = vmatprep.mubr.bf16.mxu0 0
        %800 = vmatmul.mubr.bf16.gmra.mrb[0].mxu0 %v741
        %v801 = vpop.f32.mrb[0].mxu0
        %v802 = vadd.f32 %v718, %v801
        %v803 = vpop.f32.mrb[0].mxu0
        %v804 = vpop.f32.mrb[0].mxu0
        %v805 = vadd.f32 %v718, %v804
        %v806 = vpop.f32.mrb[0].mxu0
        %807 = vdwg.mxu0
        %v808 = vmax.f32 %v778, 0.0
        %v809 = vmax.f32 %v781, 0.0
        %v810 = vmax.f32 %v786, 0.0
        %v811 = vmax.f32 %v789, 0.0
        %v812 = vmax.f32 %v794, 0.0
        %v813 = vmax.f32 %v797, 0.0
        %v814 = vmax.f32 %v802, 0.0
        %v815 = vmax.f32 %v805, 0.0
        %v816 = vmul.f32 %v808, %v498
        %v817 = vmul.f32 %v809, %v498
        %v818 = vmul.f32 %v810, %v498
        %v819 = vmul.f32 %v811, %v498
        %v820 = vmul.f32 %v812, %v498
        %v821 = vmul.f32 %v813, %v498
        %v822 = vmul.f32 %v814, %v498
        %v823 = vmul.f32 %v815, %v498
        %v824 = vsel %vm408, %v816, 0.0
        %825 = vadd.xlane.f32.xlu0 %v824
        %v826 = vpop.xlane.xlu0 %825
        %v827 = vsel %vm408, %v817, 0.0
        %828 = vadd.xlane.f32.xlu0 %v827
        %v829 = vpop.xlane.xlu0 %828
        %v830 = vsel %vm408, %v818, 0.0
        %831 = vadd.xlane.f32.xlu0 %v830
        %v832 = vpop.xlane.xlu0 %831
        %v833 = vsel %vm408, %v819, 0.0
        %834 = vadd.xlane.f32.xlu0 %v833
        %v835 = vpop.xlane.xlu0 %834
        %v836 = vsel %vm408, %v820, 0.0
        %837 = vadd.xlane.f32.xlu0 %v836
        %v838 = vpop.xlane.xlu0 %837
        %v839 = vsel %vm408, %v821, 0.0
        %840 = vadd.xlane.f32.xlu0 %v839
        %v841 = vpop.xlane.xlu0 %840
        %v842 = vsel %vm408, %v822, 0.0
        %843 = vadd.xlane.f32.xlu0 %v842
        %v844 = vpop.xlane.xlu0 %843
        %v845 = vsel %vm408, %v823, 0.0
        %846 = vadd.xlane.f32.xlu0 %v845
        %v847 = vpop.xlane.xlu0 %846
        %v848 = vadd.f32 %v826, %v536
        %v849 = vadd.f32 %v829, %v536
        %v850 = vadd.f32 %v832, %v536
        %v851 = vadd.f32 %v835, %v536
        %v852 = vadd.f32 %v838, %v536
        %v853 = vadd.f32 %v841, %v536
        %v854 = vadd.f32 %v844, %v536
        %v855 = vadd.f32 %v847, %v536
        %856 = vxpose.xlu0.b32.start [1/16] %v848, 128
        %857 = vxpose.xlu0.b32.cont [2/16] %v849, 128
        %858 = vxpose.xlu0.b32.cont [3/16] %v850, 128
        %859 = vxpose.xlu0.b32.cont [4/16] %v851, 128
        %860 = vxpose.xlu0.b32.cont [5/16] %v852, 128
        %861 = vxpose.xlu0.b32.cont [6/16] %v853, 128
        %862 = vxpose.xlu0.b32.cont [7/16] %v854, 128
        %863 = vxpose.xlu0.b32.cont [8/16] %v855, 128
        %864 = vxpose.xlu0.b32.cont [9/16] 0.0, 128
        %865 = vxpose.xlu0.b32.cont [10/16] 0.0, 128
        %866 = vxpose.xlu0.b32.cont [11/16] 0.0, 128
        %867 = vxpose.xlu0.b32.cont [12/16] 0.0, 128
        %868 = vxpose.xlu0.b32.cont [13/16] 0.0, 128
        %869 = vxpose.xlu0.b32.cont [14/16] 0.0, 128
        %870 = vxpose.xlu0.b32.cont [15/16] 0.0, 128
        %871 = vxpose.xlu0.b32.end [16/16] 0.0, 128
        %v872 = vpop.trf.xlu0
        %v873 = vpop.trf.xlu0
        %v874 = vpop.trf.xlu0
        %v875 = vpop.trf.xlu0
        %v876 = vpop.trf.xlu0
        %v877 = vpop.trf.xlu0
        %v878 = vpop.trf.xlu0
        %v879 = vpop.trf.xlu0
        %v880 = vpop.trf.xlu0
        %v881 = vpop.trf.xlu0
        %v882 = vpop.trf.xlu0
        %v883 = vpop.trf.xlu0
        %v884 = vpop.trf.xlu0
        %v885 = vpop.trf.xlu0
        %v886 = vpop.trf.xlu0
        %v887 = vpop.trf.xlu0
        %889 = vrot.lane.b32.xlu0 %v872, 64
        %v890 = vpop.permute.xlu0 %889
        %vm892 = vcmask 1040896
        %893 = vst.msk [vmem:[%s246] sm:$0x1] %vm892, %v890
        %s894 = sand.u32 %s161, 1
        %s895 = scalar_lea.sflag [#allocation4], %s894
        %s896 = sand.u32 %s161, 1
        %s897 = scalar_lea.vmem [#allocation3], %s896
        // Predicated region
        $region45: #{tpu_custom_call.1} parent=43 // pred_check
          %p898 = pneg %p171
        $region46: #{tpu_custom_call.1} parent=43 // pred_check_branch
          %900 = sbr.rel (%p898) target = $region48
        $region47: #{tpu_custom_call.1} parent=43 // pred_region
          %s902 = ssub.s32 16, 16
          %903 = vsyncadd %s895, %s902
          %s904 = smul.addr %s22, 16
          %s905 = scalar_lea.hbm %s6, %s904
          %s907 = sshll.u32 %s897, 4
          %s908 = int_to_ptr.vmem [resolvable:$true] %s907
          %910 = dma.vmem_to_hbm [thread:$0]  %s908, 16, %s905, %s895
        $region48: #{tpu_custom_call.1} parent=43 // pred_fallthru
          _
      $region44: #{tpu_custom_call.1} parent=5 // pred_fallthru
        _
      %p911 = scmp.le.s32.totalorder 2, %s17
      // Predicated region
      $region49: #{tpu_custom_call.1} parent=5 // pred_check
        %p912 = pneg %p911
      $region50: #{tpu_custom_call.1} parent=5 // pred_check_branch
        %914 = sbr.rel (%p912) target = $region52
      $region51: #{tpu_custom_call.1} parent=5 // pred_region
        %s915 = ssub.s32 %s17, 2
        // Predicated region
        $region53: #{tpu_custom_call.1} parent=51 // pred_check
          %p916 = pneg %p177
        $region54: #{tpu_custom_call.1} parent=51 // pred_check_branch
          %918 = sbr.rel (%p916) target = $region56
        $region55: #{tpu_custom_call.1} parent=51 // pred_region
          %s919 = sand.u32 %s162, 1
          %s920 = scalar_lea.sflag [#allocation4], %s919
          %s921 = sand.u32 %s162, 1
          %s922 = scalar_lea.vmem [#allocation3], %s921
          %923 = dma.done %s920, 16
        $region56: #{tpu_custom_call.1} parent=51 // pred_fallthru
          _
      $region52: #{tpu_custom_call.1} parent=5 // pred_fallthru
        _
    $region6: #{tpu_custom_call.1} parent=1 // loop_footer
      %s21 = sadd.s32 1, %s17
    $region7: #{tpu_custom_call.1} parent=1 // loop_footer_branch
      %16 = sbr.rel target = $region3
    $region8: #{tpu_custom_call.1} parent=1 // loop_exit
      _
    %924 = vsyncpa [#allocation4], 1
    %s925 = scalar_lea.sflag [#allocation4], 1
    %926 = vsyncpa %s925, 1

</llo_original>
